<compile_context>
chip_gen: v6e
topology: v6e:2x2x1
jax: 0.10.0
libtpu: 0.0.40
codegen_flags: <defaults>
</compile_context>

<pallas_src>
import functools

import jax
import jax.numpy as jnp
from jax.experimental import pallas as pl
from jax.experimental.pallas import tpu as pltpu


def _make_fused_mlp_kernel(num_linear):
    """Kernel over one (tm, d_in) row tile: chains all Linear+ReLU layers in VMEM."""

    def kernel(*refs):
        # refs = (x_ref, w0, b0, w1, b1, ..., w_{L-1}, b_{L-1}, o_ref)
        x_ref = refs[0]
        o_ref = refs[1 + 2 * num_linear]

        h = x_ref[...].astype(jnp.float32)
        for l in range(num_linear):
            w_ref = refs[1 + 2 * l]
            b_ref = refs[2 + 2 * l]
            lhs = h.astype(w_ref.dtype)                      # no-op in the f32 path
            y = jnp.dot(lhs, w_ref[...], preferred_element_type=jnp.float32)
            h = jnp.maximum(y + b_ref[...].astype(jnp.float32), 0.0)  # ReLU after every Linear
        o_ref[...] = h.astype(o_ref.dtype)

    return kernel


def _pick_row_tile(M):
    """Row-tile size: full batch if small, else an (8,128)-legal divisor."""
    if M <= 256:
        return M                      # full leading dim -> always layout-legal
    for cand in (512, 256, 128):
        if M % cand == 0:
            return cand
    return M                          # fallback: single tile of all rows


def latent_translator_forward(x, params):
    """Fused forward: x -> [Linear + ReLU] * len(params) in one pallas_call.

    x: (M, d_in) float32; params: list of (w, b) with w (fan_in, fan_out), b (fan_out,).
    Weights/biases are used at the dtype they are passed in (f32 or bf16); the MXU
    always accumulates in f32.
    """
    M, d_in = x.shape
    num_linear = len(params)
    d_out = params[-1][0].shape[1]

    tm = _pick_row_tile(M)
    grid = (M // tm,)

    inputs = [x]
    in_specs = [pl.BlockSpec((tm, d_in), lambda i: (i, 0))]
    for (w, b) in params:
        k, n = w.shape
        inputs.append(w)
        inputs.append(b.reshape(1, n))
        # Weights/biases: full-array blocks, constant index map -> resident in VMEM,
        # never re-fetched across batch-row grid steps.
        in_specs.append(pl.BlockSpec((k, n), lambda i: (0, 0)))
        in_specs.append(pl.BlockSpec((1, n), lambda i: (0, 0)))

    out_spec = pl.BlockSpec((tm, d_out), lambda i: (i, 0))

    # Explicit VMEM budget: resident params (double-buffered by the pipeline),
    # pipelined row tiles, activation temporaries + headroom. Capped for v7x (64 MiB).
    # TODO(synk): if params ever exceed the VMEM cap (e.g. latent_dim=2048 * many
    # layers on v7x), add an N-tiling grid axis instead of keeping weights resident.
    param_bytes = sum(int(a.nbytes) for a in inputs[1:])
    io_bytes = 2 * (tm * d_in + tm * d_out) * 4
    act_bytes = 2 * tm * max(w.shape[1] for (w, _) in params) * 4
    vmem_limit = int(
        min(max(2 * param_bytes + io_bytes + act_bytes + (4 << 20), 32 << 20), 64 << 20)
    )

    # Megacore sharding only pays off when there is real work to split across cores.
    semantics = ("parallel",) if grid[0] > 1 else ("arbitrary",)

    kernel = _make_fused_mlp_kernel(num_linear)

    return pl.pallas_call(
        kernel,
        out_shape=jax.ShapeDtypeStruct((M, d_out), x.dtype),
        grid_spec=pltpu.PrefetchScalarGridSpec(
            num_scalar_prefetch=0,
            grid=grid,
            in_specs=in_specs,
            out_specs=out_spec,
        ),
        compiler_params=pltpu.CompilerParams(
            dimension_semantics=semantics,
            vmem_limit_bytes=vmem_limit,
        ),
    )(*inputs)


def init_latent_translator_params(key, latent_dim, hidden_dim, num_layers):
    """Deterministic init mirroring nn.Linear default U[-1/sqrt(fan_in), 1/sqrt(fan_in)].

    Weights stored (in_features, out_features) so the forward is x @ W + b.
    """
    dims = [(latent_dim, hidden_dim)]
    dims += [(hidden_dim, hidden_dim)] * (num_layers - 1)
    dims += [(hidden_dim, latent_dim)]

    params = []
    for (fan_in, fan_out) in dims:
        key, kw, kb = jax.random.split(key, 3)
        bound = 1.0 / jnp.sqrt(jnp.float32(fan_in))
        w = jax.random.uniform(kw, (fan_in, fan_out), jnp.float32, -bound, bound)
        b = jax.random.uniform(kb, (fan_out,), jnp.float32, -bound, bound)
        params.append((w, b))
    return params


def cast_params(params, dtype):
    """One-time cast of weights/biases (do this OUTSIDE the hot path)."""
    return [(w.astype(dtype), b.astype(dtype)) for (w, b) in params]


def reference_forward(x, params):
    for (w, b) in params:
        x = jnp.maximum(x @ w + b, 0.0)
    return x


fwd = jax.jit(latent_translator_forward)


if __name__ == "__main__":
    # Small shapes consistent with the module (its default latent_dim=2048 is scaled
    # down): latent_dim=256, hidden_dim=256, num_layers=3 -> 4 Linear+ReLU layers.
    LATENT_DIM = 256
    HIDDEN_DIM = 256
    NUM_LAYERS = 3
    BATCH = 8

    key = jax.random.PRNGKey(0)
    key, kx = jax.random.split(key)
    x = jax.random.normal(kx, (BATCH, LATENT_DIM), jnp.float32)
    params = init_latent_translator_params(key, LATENT_DIM, HIDDEN_DIM, NUM_LAYERS)

    ref = reference_forward(x, params)

    # f32 compute path: strict check against the pure-JAX reference.
    out = jax.block_until_ready(fwd(x, params))
    assert out.shape == (BATCH, LATENT_DIM)
    assert jnp.allclose(out, ref, atol=1e-4, rtol=1e-4), "f32 mismatch vs reference"

    # bf16 compute path (weights + biases pre-cast once, f32 MXU accumulation):
    # halves resident weight bytes for the memory-bound regime; looser tolerance.
    params_bf16 = cast_params(params, jnp.bfloat16)
    out_bf16 = jax.block_until_ready(fwd(x, params_bf16))
    assert out_bf16.shape == (BATCH, LATENT_DIM)
    assert jnp.allclose(out_bf16, ref, atol=5e-2, rtol=5e-2), "bf16 mismatch vs reference"

    print("KERNEL_OK")
</pallas_src>

<mosaic_0001>
module attributes {stable_mosaic.version = 11 : i64} {
  func.func @kernel(%arg0: i32, %arg1: memref<8x256xf32, #tpu.memory_space<vmem>>, %arg2: memref<256x256xf32, #tpu.memory_space<vmem>>, %arg3: memref<1x256xf32, #tpu.memory_space<vmem>>, %arg4: memref<256x256xf32, #tpu.memory_space<vmem>>, %arg5: memref<1x256xf32, #tpu.memory_space<vmem>>, %arg6: memref<256x256xf32, #tpu.memory_space<vmem>>, %arg7: memref<1x256xf32, #tpu.memory_space<vmem>>, %arg8: memref<256x256xf32, #tpu.memory_space<vmem>>, %arg9: memref<1x256xf32, #tpu.memory_space<vmem>>, %arg10: memref<8x256xf32, #tpu.memory_space<vmem>>) attributes {dimension_semantics = [#tpu.dimension_semantics<arbitrary>], iteration_bounds = array<i64: 1>, scalar_prefetch = 0 : i64, scratch_operands = 0 : i64, tpu.core_type = #tpu.core_type<tc>, window_params = [{transform_indices = @transform_0, window_bounds = array<i64: 8, 256>}, {pipeline_mode = #tpu.pipeline_mode<synchronous>, transform_indices = @transform_1, window_bounds = array<i64: 256, 256>}, {pipeline_mode = #tpu.pipeline_mode<synchronous>, transform_indices = @transform_2, window_bounds = array<i64: 1, 256>}, {pipeline_mode = #tpu.pipeline_mode<synchronous>, transform_indices = @transform_3, window_bounds = array<i64: 256, 256>}, {pipeline_mode = #tpu.pipeline_mode<synchronous>, transform_indices = @transform_4, window_bounds = array<i64: 1, 256>}, {pipeline_mode = #tpu.pipeline_mode<synchronous>, transform_indices = @transform_5, window_bounds = array<i64: 256, 256>}, {pipeline_mode = #tpu.pipeline_mode<synchronous>, transform_indices = @transform_6, window_bounds = array<i64: 1, 256>}, {pipeline_mode = #tpu.pipeline_mode<synchronous>, transform_indices = @transform_7, window_bounds = array<i64: 256, 256>}, {pipeline_mode = #tpu.pipeline_mode<synchronous>, transform_indices = @transform_8, window_bounds = array<i64: 1, 256>}, {transform_indices = @transform_9, window_bounds = array<i64: 8, 256>}]} {
    %c0 = arith.constant 0 : index
    %c0_0 = arith.constant 0 : index
    %0 = vector.load %arg1[%c0, %c0_0] : memref<8x256xf32, #tpu.memory_space<vmem>>, vector<8x256xf32>
    %c0_1 = arith.constant 0 : index
    %c0_2 = arith.constant 0 : index
    %1 = vector.load %arg2[%c0_1, %c0_2] : memref<256x256xf32, #tpu.memory_space<vmem>>, vector<256x256xf32>
    %cst = arith.constant dense<0.000000e+00> : vector<8x256xf32>
    %2 = tpu.matmul %0, %1, %cst {dimension_numbers = #tpu.dot_dimension_numbers<[1], [0], [0], [1], [0, 0, 1, 1], [], []>} : vector<8x256xf32>, vector<256x256xf32>, vector<8x256xf32> -> vector<8x256xf32>
    %c0_3 = arith.constant 0 : index
    %c0_4 = arith.constant 0 : index
    %3 = vector.load %arg3[%c0_3, %c0_4] : memref<1x256xf32, #tpu.memory_space<vmem>>, vector<1x256xf32>
    %4 = vector.broadcast %3 : vector<1x256xf32> to vector<8x256xf32>
    %5 = arith.addf %2, %4 : vector<8x256xf32>
    %cst_5 = arith.constant 0.000000e+00 : f32
    %6 = vector.broadcast %cst_5 : f32 to vector<8x256xf32>
    %7 = arith.maximumf %5, %6 : vector<8x256xf32>
    %c0_6 = arith.constant 0 : index
    %c0_7 = arith.constant 0 : index
    %8 = vector.load %arg4[%c0_6, %c0_7] : memref<256x256xf32, #tpu.memory_space<vmem>>, vector<256x256xf32>
    %cst_8 = arith.constant dense<0.000000e+00> : vector<8x256xf32>
    %9 = tpu.matmul %7, %8, %cst_8 {dimension_numbers = #tpu.dot_dimension_numbers<[1], [0], [0], [1], [0, 0, 1, 1], [], []>} : vector<8x256xf32>, vector<256x256xf32>, vector<8x256xf32> -> vector<8x256xf32>
    %c0_9 = arith.constant 0 : index
    %c0_10 = arith.constant 0 : index
    %10 = vector.load %arg5[%c0_9, %c0_10] : memref<1x256xf32, #tpu.memory_space<vmem>>, vector<1x256xf32>
    %11 = vector.broadcast %10 : vector<1x256xf32> to vector<8x256xf32>
    %12 = arith.addf %9, %11 : vector<8x256xf32>
    %cst_11 = arith.constant 0.000000e+00 : f32
    %13 = vector.broadcast %cst_11 : f32 to vector<8x256xf32>
    %14 = arith.maximumf %12, %13 : vector<8x256xf32>
    %c0_12 = arith.constant 0 : index
    %c0_13 = arith.constant 0 : index
    %15 = vector.load %arg6[%c0_12, %c0_13] : memref<256x256xf32, #tpu.memory_space<vmem>>, vector<256x256xf32>
    %cst_14 = arith.constant dense<0.000000e+00> : vector<8x256xf32>
    %16 = tpu.matmul %14, %15, %cst_14 {dimension_numbers = #tpu.dot_dimension_numbers<[1], [0], [0], [1], [0, 0, 1, 1], [], []>} : vector<8x256xf32>, vector<256x256xf32>, vector<8x256xf32> -> vector<8x256xf32>
    %c0_15 = arith.constant 0 : index
    %c0_16 = arith.constant 0 : index
    %17 = vector.load %arg7[%c0_15, %c0_16] : memref<1x256xf32, #tpu.memory_space<vmem>>, vector<1x256xf32>
    %18 = vector.broadcast %17 : vector<1x256xf32> to vector<8x256xf32>
    %19 = arith.addf %16, %18 : vector<8x256xf32>
    %cst_17 = arith.constant 0.000000e+00 : f32
    %20 = vector.broadcast %cst_17 : f32 to vector<8x256xf32>
    %21 = arith.maximumf %19, %20 : vector<8x256xf32>
    %c0_18 = arith.constant 0 : index
    %c0_19 = arith.constant 0 : index
    %22 = vector.load %arg8[%c0_18, %c0_19] : memref<256x256xf32, #tpu.memory_space<vmem>>, vector<256x256xf32>
    %cst_20 = arith.constant dense<0.000000e+00> : vector<8x256xf32>
    %23 = tpu.matmul %21, %22, %cst_20 {dimension_numbers = #tpu.dot_dimension_numbers<[1], [0], [0], [1], [0, 0, 1, 1], [], []>} : vector<8x256xf32>, vector<256x256xf32>, vector<8x256xf32> -> vector<8x256xf32>
    %c0_21 = arith.constant 0 : index
    %c0_22 = arith.constant 0 : index
    %24 = vector.load %arg9[%c0_21, %c0_22] : memref<1x256xf32, #tpu.memory_space<vmem>>, vector<1x256xf32>
    %25 = vector.broadcast %24 : vector<1x256xf32> to vector<8x256xf32>
    %26 = arith.addf %23, %25 : vector<8x256xf32>
    %cst_23 = arith.constant 0.000000e+00 : f32
    %27 = vector.broadcast %cst_23 : f32 to vector<8x256xf32>
    %28 = arith.maximumf %26, %27 : vector<8x256xf32>
    %c0_24 = arith.constant 0 : index
    %c0_25 = arith.constant 0 : index
    %29 = vector.load %arg10[%c0_24, %c0_25] : memref<8x256xf32, #tpu.memory_space<vmem>>, vector<8x256xf32>
    tpu.vector_store %arg10[%c0_24, %c0_25], %28 {strides = array<i32>} : memref<8x256xf32, #tpu.memory_space<vmem>>, vector<8x256xf32>,
    return
  }
  func.func @transform_0(%arg0: i32) -> (i32, i32) {
    %c0_i32 = arith.constant 0 : i32
    %c0_i32_0 = arith.constant 0 : i32
    return %arg0, %c0_i32 : i32, i32
  }
  func.func @transform_1(%arg0: i32) -> (i32, i32) {
    %c0_i32 = arith.constant 0 : i32
    %c0_i32_0 = arith.constant 0 : i32
    %c0_i32_1 = arith.constant 0 : i32
    return %c0_i32, %c0_i32_0 : i32, i32
  }
  func.func @transform_2(%arg0: i32) -> (i32, i32) {
    %c0_i32 = arith.constant 0 : i32
    %c0_i32_0 = arith.constant 0 : i32
    %c0_i32_1 = arith.constant 0 : i32
    return %c0_i32, %c0_i32_0 : i32, i32
  }
  func.func @transform_3(%arg0: i32) -> (i32, i32) {
    %c0_i32 = arith.constant 0 : i32
    %c0_i32_0 = arith.constant 0 : i32
    %c0_i32_1 = arith.constant 0 : i32
    return %c0_i32, %c0_i32_0 : i32, i32
  }
  func.func @transform_4(%arg0: i32) -> (i32, i32) {
    %c0_i32 = arith.constant 0 : i32
    %c0_i32_0 = arith.constant 0 : i32
    %c0_i32_1 = arith.constant 0 : i32
    return %c0_i32, %c0_i32_0 : i32, i32
  }
  func.func @transform_5(%arg0: i32) -> (i32, i32) {
    %c0_i32 = arith.constant 0 : i32
    %c0_i32_0 = arith.constant 0 : i32
    %c0_i32_1 = arith.constant 0 : i32
    return %c0_i32, %c0_i32_0 : i32, i32
  }
  func.func @transform_6(%arg0: i32) -> (i32, i32) {
    %c0_i32 = arith.constant 0 : i32
    %c0_i32_0 = arith.constant 0 : i32
    %c0_i32_1 = arith.constant 0 : i32
    return %c0_i32, %c0_i32_0 : i32, i32
  }
  func.func @transform_7(%arg0: i32) -> (i32, i32) {
    %c0_i32 = arith.constant 0 : i32
    %c0_i32_0 = arith.constant 0 : i32
    %c0_i32_1 = arith.constant 0 : i32
    return %c0_i32, %c0_i32_0 : i32, i32
  }
  func.func @transform_8(%arg0: i32) -> (i32, i32) {
    %c0_i32 = arith.constant 0 : i32
    %c0_i32_0 = arith.constant 0 : i32
    %c0_i32_1 = arith.constant 0 : i32
    return %c0_i32, %c0_i32_0 : i32, i32
  }
  func.func @transform_9(%arg0: i32) -> (i32, i32) {
    %c0_i32 = arith.constant 0 : i32
    %c0_i32_0 = arith.constant 0 : i32
    return %arg0, %c0_i32 : i32, i32
  }
}

</mosaic_0001>

<llo_original>
// kernel: latent_translator_forward.1
$region0: #{latent_translator_forward.1}
  #allocation0 [shape = 'u32[]', space=smem, size = 0x4, offset = 0x4, fixed_abs, tag = 'smem constant byte address 0x4 - core index']
  #allocation1 [shape = 'u32[144,128]{1,0:T(1,128)}', space=vmem, size = 0x12000, scoped, tag = 'internal scratch']
  %s0 = inlined_call_operand.hbm [shape: f32[8,256], index: 0, kind: input, shape index: {}]
  %s1 = inlined_call_operand.hbm [shape: f32[256,256], index: 1, kind: input, shape index: {}]
  %s2 = inlined_call_operand.vmem [shape: f32[1,256], index: 2, kind: input, shape index: {}]
  %s3 = inlined_call_operand.hbm [shape: f32[256,256], index: 3, kind: input, shape index: {}]
  %s4 = inlined_call_operand.vmem [shape: f32[1,256], index: 4, kind: input, shape index: {}]
  %s5 = inlined_call_operand.hbm [shape: f32[256,256], index: 5, kind: input, shape index: {}]
  %s6 = inlined_call_operand.vmem [shape: f32[1,256], index: 6, kind: input, shape index: {}]
  %s7 = inlined_call_operand.hbm [shape: f32[256,256], index: 7, kind: input, shape index: {}]
  %s8 = inlined_call_operand.vmem [shape: f32[1,256], index: 8, kind: input, shape index: {}]
  %s9 = inlined_call_operand.hbm [shape: f32[8,256], index: 9, kind: output, shape index: {}]
  %s10 = sld [smem:[#allocation0]]
  $region66: #{latent_translator_forward.1} parent=0
    _
  %s12 = ssub.s32 1, %s10
  %s13 = scalar_select 0, %s12, %s10
  $region1: #{latent_translator_forward.1} parent=0
    #allocation2 [shape = 'u8[8192]{0}', space=vmem, size = 0x2000, scoped, tag = 'input window, operand 0, single buffered']
    #allocation3 [shape = 's32[1]{0}', space=sflag, size = 0x4, scoped, tag = 'scoped memory for latent_translator_forward.1']
    #allocation4 [shape = 's32[1]{0}', space=sflag, size = 0x4, scoped, tag = 'scoped memory for latent_translator_forward.1']
    #allocation5 [shape = 'u8[262144]{0}', space=vmem, size = 0x40000, scoped, tag = 'input window, operand 1, single buffered']
    #allocation6 [shape = 's32[1]{0}', space=sflag, size = 0x4, scoped, tag = 'scoped memory for latent_translator_forward.1']
    #allocation7 [shape = 'u8[262144]{0}', space=vmem, size = 0x40000, scoped, tag = 'input window, operand 3, single buffered']
    #allocation8 [shape = 'u8[262144]{0}', space=vmem, size = 0x40000, scoped, tag = 'input window, operand 5, single buffered']
    #allocation9 [shape = 's32[1]{0}', space=sflag, size = 0x4, scoped, tag = 'scoped memory for latent_translator_forward.1']
    #allocation10 [shape = 'u8[262144]{0}', space=vmem, size = 0x40000, scoped, tag = 'input window, operand 7, single buffered']
    #allocation11 [shape = 'u8[8192]{0}', space=vmem, size = 0x2000, scoped, tag = 'output window, operand 0, single buffered']
    %14 = vsyncpa [#allocation3], 0
    %15 = vsyncpa [#allocation6], 0
    %16 = vsyncpa [#allocation9], 0
    %17 = vsyncpa [#allocation4], 0
    // Predicated region
    $region2: #{latent_translator_forward.1} parent=1 // pred_check
      _
    $region3: #{latent_translator_forward.1} parent=1 // pred_check_branch
      %19 = sbr.rel (0) target = $region5
    $region4: #{latent_translator_forward.1} parent=1 // pred_region
      %s21 = ssub.s32 256, 256
      %22 = vsyncadd [#allocation3], %s21
      %s24 = sshll.u32 [#allocation2], 4
      %s25 = int_to_ptr.vmem [resolvable:$true] %s24
      %27 = dma.hbm_to_vmem [thread:$0]  %s0, 256, %s25, [#allocation3]
    $region5: #{latent_translator_forward.1} parent=1 // pred_fallthru
      _
    // Predicated region
    $region6: #{latent_translator_forward.1} parent=1 // pred_check
      _
    $region7: #{latent_translator_forward.1} parent=1 // pred_check_branch
      %29 = sbr.rel (0) target = $region9
    $region8: #{latent_translator_forward.1} parent=1 // pred_region
      %s31 = ssub.s32 8192, 8192
      %32 = vsyncadd [#allocation6], %s31
      %s33 = sshll.u32 [#allocation5], 4
      %s34 = int_to_ptr.vmem [resolvable:$true] %s33
      %39 = dma.hbm_to_vmem [thread:$0]  %s1, 8192, %s34, [#allocation6], 256, 256, 16
    $region9: #{latent_translator_forward.1} parent=1 // pred_fallthru
      _
    // Predicated region
    $region10: #{latent_translator_forward.1} parent=1 // pred_check
      _
    $region11: #{latent_translator_forward.1} parent=1 // pred_check_branch
      %41 = sbr.rel (0) target = $region13
    $region12: #{latent_translator_forward.1} parent=1 // pred_region
      _
    $region13: #{latent_translator_forward.1} parent=1 // pred_fallthru
      _
    // Predicated region
    $region14: #{latent_translator_forward.1} parent=1 // pred_check
      _
    $region15: #{latent_translator_forward.1} parent=1 // pred_check_branch
      %43 = sbr.rel (0) target = $region17
    $region16: #{latent_translator_forward.1} parent=1 // pred_region
      %s45 = ssub.s32 8192, 8192
      %46 = vsyncadd [#allocation6], %s45
      %s47 = sshll.u32 [#allocation7], 4
      %s48 = int_to_ptr.vmem [resolvable:$true] %s47
      %53 = dma.hbm_to_vmem [thread:$0]  %s3, 8192, %s48, [#allocation6], 256, 256, 16
    $region17: #{latent_translator_forward.1} parent=1 // pred_fallthru
      _
    // Predicated region
    $region18: #{latent_translator_forward.1} parent=1 // pred_check
      _
    $region19: #{latent_translator_forward.1} parent=1 // pred_check_branch
      %55 = sbr.rel (0) target = $region21
    $region20: #{latent_translator_forward.1} parent=1 // pred_region
      _
    $region21: #{latent_translator_forward.1} parent=1 // pred_fallthru
      _
    // Predicated region
    $region22: #{latent_translator_forward.1} parent=1 // pred_check
      _
    $region23: #{latent_translator_forward.1} parent=1 // pred_check_branch
      %57 = sbr.rel (0) target = $region25
    $region24: #{latent_translator_forward.1} parent=1 // pred_region
      %s59 = ssub.s32 8192, 8192
      %60 = vsyncadd [#allocation9], %s59
      %s61 = sshll.u32 [#allocation8], 4
      %s62 = int_to_ptr.vmem [resolvable:$true] %s61
      %67 = dma.hbm_to_vmem [thread:$0]  %s5, 8192, %s62, [#allocation9], 256, 256, 16
    $region25: #{latent_translator_forward.1} parent=1 // pred_fallthru
      _
    // Predicated region
    $region26: #{latent_translator_forward.1} parent=1 // pred_check
      _
    $region27: #{latent_translator_forward.1} parent=1 // pred_check_branch
      %69 = sbr.rel (0) target = $region29
    $region28: #{latent_translator_forward.1} parent=1 // pred_region
      _
    $region29: #{latent_translator_forward.1} parent=1 // pred_fallthru
      _
    // Predicated region
    $region30: #{latent_translator_forward.1} parent=1 // pred_check
      _
    $region31: #{latent_translator_forward.1} parent=1 // pred_check_branch
      %71 = sbr.rel (0) target = $region33
    $region32: #{latent_translator_forward.1} parent=1 // pred_region
      %s73 = ssub.s32 8192, 8192
      %74 = vsyncadd [#allocation9], %s73
      %s75 = sshll.u32 [#allocation10], 4
      %s76 = int_to_ptr.vmem [resolvable:$true] %s75
      %81 = dma.hbm_to_vmem [thread:$0]  %s7, 8192, %s76, [#allocation9], 256, 256, 16
    $region33: #{latent_translator_forward.1} parent=1 // pred_fallthru
      _
    // Predicated region
    $region34: #{latent_translator_forward.1} parent=1 // pred_check
      _
    $region35: #{latent_translator_forward.1} parent=1 // pred_check_branch
      %83 = sbr.rel (0) target = $region37
    $region36: #{latent_translator_forward.1} parent=1 // pred_region
      _
    $region37: #{latent_translator_forward.1} parent=1 // pred_fallthru
      _
    // Predicated region
    $region38: #{latent_translator_forward.1} parent=1 // pred_check
      _
    $region39: #{latent_translator_forward.1} parent=1 // pred_check_branch
      %85 = sbr.rel (0) target = $region41
    $region40: #{latent_translator_forward.1} parent=1 // pred_region
      %86 = dma.done [#allocation3], 256
    $region41: #{latent_translator_forward.1} parent=1 // pred_fallthru
      _
    // Predicated region
    $region42: #{latent_translator_forward.1} parent=1 // pred_check
      _
    $region43: #{latent_translator_forward.1} parent=1 // pred_check_branch
      %88 = sbr.rel (0) target = $region45
    $region44: #{latent_translator_forward.1} parent=1 // pred_region
      %89 = dma.done [#allocation6], 8192
    $region45: #{latent_translator_forward.1} parent=1 // pred_fallthru
      _
    // Predicated region
    $region46: #{latent_translator_forward.1} parent=1 // pred_check
      _
    $region47: #{latent_translator_forward.1} parent=1 // pred_check_branch
      %91 = sbr.rel (0) target = $region49
    $region48: #{latent_translator_forward.1} parent=1 // pred_region
      %92 = dma.done [#allocation6], 8192
    $region49: #{latent_translator_forward.1} parent=1 // pred_fallthru
      _
    // Predicated region
    $region50: #{latent_translator_forward.1} parent=1 // pred_check
      _
    $region51: #{latent_translator_forward.1} parent=1 // pred_check_branch
      %94 = sbr.rel (0) target = $region53
    $region52: #{latent_translator_forward.1} parent=1 // pred_region
      %95 = dma.done [#allocation9], 8192
    $region53: #{latent_translator_forward.1} parent=1 // pred_fallthru
      _
    // Predicated region
    $region54: #{latent_translator_forward.1} parent=1 // pred_check
      _
    $region55: #{latent_translator_forward.1} parent=1 // pred_check_branch
      %97 = sbr.rel (0) target = $region57
    $region56: #{latent_translator_forward.1} parent=1 // pred_region
      %98 = dma.done [#allocation9], 8192
    $region57: #{latent_translator_forward.1} parent=1 // pred_fallthru
      _
    %v99 = vld [vmem:[#allocation2] sm:$0xff]
    %v100 = vld [vmem:[#allocation2 + $0x8] sm:$0xff]
    %v101 = vld [vmem:[#allocation5] sm:$0xff]
    %v102 = vld [vmem:[#allocation5 + $0x8] sm:$0xff]
    %v103 = vld [vmem:[#allocation5 + $0x10] sm:$0xff]
    %v104 = vld [vmem:[#allocation5 + $0x18] sm:$0xff]
    %v105 = vld [vmem:[#allocation5 + $0x20] sm:$0xff]
    %v106 = vld [vmem:[#allocation5 + $0x28] sm:$0xff]
    %v107 = vld [vmem:[#allocation5 + $0x30] sm:$0xff]
    %v108 = vld [vmem:[#allocation5 + $0x38] sm:$0xff]
    %v109 = vld [vmem:[#allocation5 + $0x40] sm:$0xff]
    %v110 = vld [vmem:[#allocation5 + $0x48] sm:$0xff]
    %v111 = vld [vmem:[#allocation5 + $0x50] sm:$0xff]
    %v112 = vld [vmem:[#allocation5 + $0x58] sm:$0xff]
    %v113 = vld [vmem:[#allocation5 + $0x60] sm:$0xff]
    %v114 = vld [vmem:[#allocation5 + $0x68] sm:$0xff]
    %v115 = vld [vmem:[#allocation5 + $0x70] sm:$0xff]
    %v116 = vld [vmem:[#allocation5 + $0x78] sm:$0xff]
    %v117 = vld [vmem:[#allocation5 + $0x80] sm:$0xff]
    %v118 = vld [vmem:[#allocation5 + $0x88] sm:$0xff]
    %v119 = vld [vmem:[#allocation5 + $0x90] sm:$0xff]
    %v120 = vld [vmem:[#allocation5 + $0x98] sm:$0xff]
    %v121 = vld [vmem:[#allocation5 + $0xa0] sm:$0xff]
    %v122 = vld [vmem:[#allocation5 + $0xa8] sm:$0xff]
    %v123 = vld [vmem:[#allocation5 + $0xb0] sm:$0xff]
    %v124 = vld [vmem:[#allocation5 + $0xb8] sm:$0xff]
    %v125 = vld [vmem:[#allocation5 + $0xc0] sm:$0xff]
    %v126 = vld [vmem:[#allocation5 + $0xc8] sm:$0xff]
    %v127 = vld [vmem:[#allocation5 + $0xd0] sm:$0xff]
    %v128 = vld [vmem:[#allocation5 + $0xd8] sm:$0xff]
    %v129 = vld [vmem:[#allocation5 + $0xe0] sm:$0xff]
    %v130 = vld [vmem:[#allocation5 + $0xe8] sm:$0xff]
    %v131 = vld [vmem:[#allocation5 + $0xf0] sm:$0xff]
    %v132 = vld [vmem:[#allocation5 + $0xf8] sm:$0xff]
    %v133 = vld [vmem:[#allocation5 + $0x100] sm:$0xff]
    %v134 = vld [vmem:[#allocation5 + $0x108] sm:$0xff]
    %v135 = vld [vmem:[#allocation5 + $0x110] sm:$0xff]
    %v136 = vld [vmem:[#allocation5 + $0x118] sm:$0xff]
    %v137 = vld [vmem:[#allocation5 + $0x120] sm:$0xff]
    %v138 = vld [vmem:[#allocation5 + $0x128] sm:$0xff]
    %v139 = vld [vmem:[#allocation5 + $0x130] sm:$0xff]
    %v140 = vld [vmem:[#allocation5 + $0x138] sm:$0xff]
    %v141 = vld [vmem:[#allocation5 + $0x140] sm:$0xff]
    %v142 = vld [vmem:[#allocation5 + $0x148] sm:$0xff]
    %v143 = vld [vmem:[#allocation5 + $0x150] sm:$0xff]
    %v144 = vld [vmem:[#allocation5 + $0x158] sm:$0xff]
    %v145 = vld [vmem:[#allocation5 + $0x160] sm:$0xff]
    %v146 = vld [vmem:[#allocation5 + $0x168] sm:$0xff]
    %v147 = vld [vmem:[#allocation5 + $0x170] sm:$0xff]
    %v148 = vld [vmem:[#allocation5 + $0x178] sm:$0xff]
    %v149 = vld [vmem:[#allocation5 + $0x180] sm:$0xff]
    %v150 = vld [vmem:[#allocation5 + $0x188] sm:$0xff]
    %v151 = vld [vmem:[#allocation5 + $0x190] sm:$0xff]
    %v152 = vld [vmem:[#allocation5 + $0x198] sm:$0xff]
    %v153 = vld [vmem:[#allocation5 + $0x1a0] sm:$0xff]
    %v154 = vld [vmem:[#allocation5 + $0x1a8] sm:$0xff]
    %v155 = vld [vmem:[#allocation5 + $0x1b0] sm:$0xff]
    %v156 = vld [vmem:[#allocation5 + $0x1b8] sm:$0xff]
    %v157 = vld [vmem:[#allocation5 + $0x1c0] sm:$0xff]
    %v158 = vld [vmem:[#allocation5 + $0x1c8] sm:$0xff]
    %v159 = vld [vmem:[#allocation5 + $0x1d0] sm:$0xff]
    %v160 = vld [vmem:[#allocation5 + $0x1d8] sm:$0xff]
    %v161 = vld [vmem:[#allocation5 + $0x1e0] sm:$0xff]
    %v162 = vld [vmem:[#allocation5 + $0x1e8] sm:$0xff]
    %v163 = vld [vmem:[#allocation5 + $0x1f0] sm:$0xff]
    %v164 = vld [vmem:[#allocation5 + $0x1f8] sm:$0xff]
    %v165 = vld [vmem:[%s2] sm:$0x3]
    %v167 = vlaneseq
    %v168 = vshrl.u32 %v167, 7
    %v169 = vsub.s32 0, %v168
    %v170 = vrot.slane %v165, %v169
    %v171 = vlaneseq
    %v172 = vshrl.u32 %v171, 7
    %v173 = vsub.s32 1, %v172
    %v174 = vrot.slane %v165, %v173
    %177 = vmatprep.subr.mxu0 %v132
    %178 = vmatpush1.msra.mxu0 %v131
    %179 = vmatprep.subr.mxu0 %v130
    %180 = vmatpush1.msra.mxu0 %v129
    %181 = vmatprep.subr.mxu0 %v128
    %182 = vmatpush1.msra.mxu0 %v127
    %183 = vmatprep.subr.mxu0 %v126
    %184 = vmatpush1.msra.mxu0 %v125
    %185 = vmatprep.subr.mxu0 %v124
    %186 = vmatpush1.msra.mxu0 %v123
    %187 = vmatprep.subr.mxu0 %v122
    %188 = vmatpush1.msra.mxu0 %v121
    %189 = vmatprep.subr.mxu0 %v120
    %190 = vmatpush1.msra.mxu0 %v119
    %191 = vmatprep.subr.mxu0 %v118
    %192 = vmatpush1.msra.mxu0 %v117
    %193 = vmatprep.subr.mxu0 %v116
    %194 = vmatpush1.msra.mxu0 %v115
    %195 = vmatprep.subr.mxu0 %v114
    %196 = vmatpush1.msra.mxu0 %v113
    %197 = vmatprep.subr.mxu0 %v112
    %198 = vmatpush1.msra.mxu0 %v111
    %199 = vmatprep.subr.mxu0 %v110
    %200 = vmatpush1.msra.mxu0 %v109
    %201 = vmatprep.subr.mxu0 %v108
    %202 = vmatpush1.msra.mxu0 %v107
    %203 = vmatprep.subr.mxu0 %v106
    %204 = vmatpush1.msra.mxu0 %v105
    %205 = vmatprep.subr.mxu0 %v104
    %206 = vmatpush1.msra.mxu0 %v103
    %207 = vmatprep.subr.mxu0 %v102
    %208 = vmatpush1.msra.mxu0 %v101
    %209 = vmatprep.subr.mxu0 %v164
    %210 = vmatpush2.msra.mxu0 %v163
    %211 = vmatprep.subr.mxu0 %v162
    %212 = vmatpush2.msra.mxu0 %v161
    %213 = vmatprep.subr.mxu0 %v160
    %214 = vmatpush2.msra.mxu0 %v159
    %215 = vmatprep.subr.mxu0 %v158
    %216 = vmatpush2.msra.mxu0 %v157
    %217 = vmatprep.subr.mxu0 %v156
    %218 = vmatpush2.msra.mxu0 %v155
    %219 = vmatprep.subr.mxu0 %v154
    %220 = vmatpush2.msra.mxu0 %v153
    %221 = vmatprep.subr.mxu0 %v152
    %222 = vmatpush2.msra.mxu0 %v151
    %223 = vmatprep.subr.mxu0 %v150
    %224 = vmatpush2.msra.mxu0 %v149
    %225 = vmatprep.subr.mxu0 %v148
    %226 = vmatpush2.msra.mxu0 %v147
    %227 = vmatprep.subr.mxu0 %v146
    %228 = vmatpush2.msra.mxu0 %v145
    %229 = vmatprep.subr.mxu0 %v144
    %230 = vmatpush2.msra.mxu0 %v143
    %231 = vmatprep.subr.mxu0 %v142
    %232 = vmatpush2.msra.mxu0 %v141
    %233 = vmatprep.subr.mxu0 %v140
    %234 = vmatpush2.msra.mxu0 %v139
    %235 = vmatprep.subr.mxu0 %v138
    %236 = vmatpush2.msra.mxu0 %v137
    %237 = vmatprep.subr.mxu0 %v136
    %238 = vmatpush2.msra.mxu0 %v135
    %239 = vmatprep.subr.mxu0 %v134
    %240 = vmatpush2.msra.mxu0 %v133
    %241 = vmatprep.mubr.f32.mxu0 %v100
    %242 = vmatmul.mubr.f32.gmra.mxu0 %v99
    %v243 = vpop.f32.mrf.mxu0
    %v244 = vadd.f32 %v170, %v243
    %v245 = vpop.f32.mrf.mxu0
    %v246 = vadd.f32 %v174, %v245
    %247 = vdwg.mxu0
    %v248 = vmax.f32 %v244, 0.0
    %v249 = vmax.f32 %v246, 0.0
    %v250 = vld [vmem:[#allocation7] sm:$0xff]
    %v251 = vld [vmem:[#allocation7 + $0x8] sm:$0xff]
    %v252 = vld [vmem:[#allocation7 + $0x10] sm:$0xff]
    %v253 = vld [vmem:[#allocation7 + $0x18] sm:$0xff]
    %v254 = vld [vmem:[#allocation7 + $0x20] sm:$0xff]
    %v255 = vld [vmem:[#allocation7 + $0x28] sm:$0xff]
    %v256 = vld [vmem:[#allocation7 + $0x30] sm:$0xff]
    %v257 = vld [vmem:[#allocation7 + $0x38] sm:$0xff]
    %v258 = vld [vmem:[#allocation7 + $0x40] sm:$0xff]
    %v259 = vld [vmem:[#allocation7 + $0x48] sm:$0xff]
    %v260 = vld [vmem:[#allocation7 + $0x50] sm:$0xff]
    %v261 = vld [vmem:[#allocation7 + $0x58] sm:$0xff]
    %v262 = vld [vmem:[#allocation7 + $0x60] sm:$0xff]
    %v263 = vld [vmem:[#allocation7 + $0x68] sm:$0xff]
    %v264 = vld [vmem:[#allocation7 + $0x70] sm:$0xff]
    %v265 = vld [vmem:[#allocation7 + $0x78] sm:$0xff]
    %v266 = vld [vmem:[#allocation7 + $0x80] sm:$0xff]
    %v267 = vld [vmem:[#allocation7 + $0x88] sm:$0xff]
    %v268 = vld [vmem:[#allocation7 + $0x90] sm:$0xff]
    %v269 = vld [vmem:[#allocation7 + $0x98] sm:$0xff]
    %v270 = vld [vmem:[#allocation7 + $0xa0] sm:$0xff]
    %v271 = vld [vmem:[#allocation7 + $0xa8] sm:$0xff]
    %v272 = vld [vmem:[#allocation7 + $0xb0] sm:$0xff]
    %v273 = vld [vmem:[#allocation7 + $0xb8] sm:$0xff]
    %v274 = vld [vmem:[#allocation7 + $0xc0] sm:$0xff]
    %v275 = vld [vmem:[#allocation7 + $0xc8] sm:$0xff]
    %v276 = vld [vmem:[#allocation7 + $0xd0] sm:$0xff]
    %v277 = vld [vmem:[#allocation7 + $0xd8] sm:$0xff]
    %v278 = vld [vmem:[#allocation7 + $0xe0] sm:$0xff]
    %v279 = vld [vmem:[#allocation7 + $0xe8] sm:$0xff]
    %v280 = vld [vmem:[#allocation7 + $0xf0] sm:$0xff]
    %v281 = vld [vmem:[#allocation7 + $0xf8] sm:$0xff]
    %v282 = vld [vmem:[#allocation7 + $0x100] sm:$0xff]
    %v283 = vld [vmem:[#allocation7 + $0x108] sm:$0xff]
    %v284 = vld [vmem:[#allocation7 + $0x110] sm:$0xff]
    %v285 = vld [vmem:[#allocation7 + $0x118] sm:$0xff]
    %v286 = vld [vmem:[#allocation7 + $0x120] sm:$0xff]
    %v287 = vld [vmem:[#allocation7 + $0x128] sm:$0xff]
    %v288 = vld [vmem:[#allocation7 + $0x130] sm:$0xff]
    %v289 = vld [vmem:[#allocation7 + $0x138] sm:$0xff]
    %v290 = vld [vmem:[#allocation7 + $0x140] sm:$0xff]
    %v291 = vld [vmem:[#allocation7 + $0x148] sm:$0xff]
    %v292 = vld [vmem:[#allocation7 + $0x150] sm:$0xff]
    %v293 = vld [vmem:[#allocation7 + $0x158] sm:$0xff]
    %v294 = vld [vmem:[#allocation7 + $0x160] sm:$0xff]
    %v295 = vld [vmem:[#allocation7 + $0x168] sm:$0xff]
    %v296 = vld [vmem:[#allocation7 + $0x170] sm:$0xff]
    %v297 = vld [vmem:[#allocation7 + $0x178] sm:$0xff]
    %v298 = vld [vmem:[#allocation7 + $0x180] sm:$0xff]
    %v299 = vld [vmem:[#allocation7 + $0x188] sm:$0xff]
    %v300 = vld [vmem:[#allocation7 + $0x190] sm:$0xff]
    %v301 = vld [vmem:[#allocation7 + $0x198] sm:$0xff]
    %v302 = vld [vmem:[#allocation7 + $0x1a0] sm:$0xff]
    %v303 = vld [vmem:[#allocation7 + $0x1a8] sm:$0xff]
    %v304 = vld [vmem:[#allocation7 + $0x1b0] sm:$0xff]
    %v305 = vld [vmem:[#allocation7 + $0x1b8] sm:$0xff]
    %v306 = vld [vmem:[#allocation7 + $0x1c0] sm:$0xff]
    %v307 = vld [vmem:[#allocation7 + $0x1c8] sm:$0xff]
    %v308 = vld [vmem:[#allocation7 + $0x1d0] sm:$0xff]
    %v309 = vld [vmem:[#allocation7 + $0x1d8] sm:$0xff]
    %v310 = vld [vmem:[#allocation7 + $0x1e0] sm:$0xff]
    %v311 = vld [vmem:[#allocation7 + $0x1e8] sm:$0xff]
    %v312 = vld [vmem:[#allocation7 + $0x1f0] sm:$0xff]
    %v313 = vld [vmem:[#allocation7 + $0x1f8] sm:$0xff]
    %v314 = vld [vmem:[%s4] sm:$0x3]
    %v316 = vlaneseq
    %v317 = vshrl.u32 %v316, 7
    %v318 = vsub.s32 0, %v317
    %v319 = vrot.slane %v314, %v318
    %v320 = vlaneseq
    %v321 = vshrl.u32 %v320, 7
    %v322 = vsub.s32 1, %v321
    %v323 = vrot.slane %v314, %v322
    %326 = vmatprep.subr.mxu0 %v281
    %327 = vmatpush1.msra.mxu0 %v280
    %328 = vmatprep.subr.mxu0 %v279
    %329 = vmatpush1.msra.mxu0 %v278
    %330 = vmatprep.subr.mxu0 %v277
    %331 = vmatpush1.msra.mxu0 %v276
    %332 = vmatprep.subr.mxu0 %v275
    %333 = vmatpush1.msra.mxu0 %v274
    %334 = vmatprep.subr.mxu0 %v273
    %335 = vmatpush1.msra.mxu0 %v272
    %336 = vmatprep.subr.mxu0 %v271
    %337 = vmatpush1.msra.mxu0 %v270
    %338 = vmatprep.subr.mxu0 %v269
    %339 = vmatpush1.msra.mxu0 %v268
    %340 = vmatprep.subr.mxu0 %v267
    %341 = vmatpush1.msra.mxu0 %v266
    %342 = vmatprep.subr.mxu0 %v265
    %343 = vmatpush1.msra.mxu0 %v264
    %344 = vmatprep.subr.mxu0 %v263
    %345 = vmatpush1.msra.mxu0 %v262
    %346 = vmatprep.subr.mxu0 %v261
    %347 = vmatpush1.msra.mxu0 %v260
    %348 = vmatprep.subr.mxu0 %v259
    %349 = vmatpush1.msra.mxu0 %v258
    %350 = vmatprep.subr.mxu0 %v257
    %351 = vmatpush1.msra.mxu0 %v256
    %352 = vmatprep.subr.mxu0 %v255
    %353 = vmatpush1.msra.mxu0 %v254
    %354 = vmatprep.subr.mxu0 %v253
    %355 = vmatpush1.msra.mxu0 %v252
    %356 = vmatprep.subr.mxu0 %v251
    %357 = vmatpush1.msra.mxu0 %v250
    %358 = vmatprep.subr.mxu0 %v313
    %359 = vmatpush2.msra.mxu0 %v312
    %360 = vmatprep.subr.mxu0 %v311
    %361 = vmatpush2.msra.mxu0 %v310
    %362 = vmatprep.subr.mxu0 %v309
    %363 = vmatpush2.msra.mxu0 %v308
    %364 = vmatprep.subr.mxu0 %v307
    %365 = vmatpush2.msra.mxu0 %v306
    %366 = vmatprep.subr.mxu0 %v305
    %367 = vmatpush2.msra.mxu0 %v304
    %368 = vmatprep.subr.mxu0 %v303
    %369 = vmatpush2.msra.mxu0 %v302
    %370 = vmatprep.subr.mxu0 %v301
    %371 = vmatpush2.msra.mxu0 %v300
    %372 = vmatprep.subr.mxu0 %v299
    %373 = vmatpush2.msra.mxu0 %v298
    %374 = vmatprep.subr.mxu0 %v297
    %375 = vmatpush2.msra.mxu0 %v296
    %376 = vmatprep.subr.mxu0 %v295
    %377 = vmatpush2.msra.mxu0 %v294
    %378 = vmatprep.subr.mxu0 %v293
    %379 = vmatpush2.msra.mxu0 %v292
    %380 = vmatprep.subr.mxu0 %v291
    %381 = vmatpush2.msra.mxu0 %v290
    %382 = vmatprep.subr.mxu0 %v289
    %383 = vmatpush2.msra.mxu0 %v288
    %384 = vmatprep.subr.mxu0 %v287
    %385 = vmatpush2.msra.mxu0 %v286
    %386 = vmatprep.subr.mxu0 %v285
    %387 = vmatpush2.msra.mxu0 %v284
    %388 = vmatprep.subr.mxu0 %v283
    %389 = vmatpush2.msra.mxu0 %v282
    %390 = vmatprep.mubr.f32.mxu0 %v249
    %391 = vmatmul.mubr.f32.gmra.mxu0 %v248
    %v392 = vpop.f32.mrf.mxu0
    %v393 = vadd.f32 %v319, %v392
    %v394 = vpop.f32.mrf.mxu0
    %v395 = vadd.f32 %v323, %v394
    %396 = vdwg.mxu0
    %v397 = vmax.f32 %v393, 0.0
    %v398 = vmax.f32 %v395, 0.0
    %v399 = vld [vmem:[#allocation8] sm:$0xff]
    %v400 = vld [vmem:[#allocation8 + $0x8] sm:$0xff]
    %v401 = vld [vmem:[#allocation8 + $0x10] sm:$0xff]
    %v402 = vld [vmem:[#allocation8 + $0x18] sm:$0xff]
    %v403 = vld [vmem:[#allocation8 + $0x20] sm:$0xff]
    %v404 = vld [vmem:[#allocation8 + $0x28] sm:$0xff]
    %v405 = vld [vmem:[#allocation8 + $0x30] sm:$0xff]
    %v406 = vld [vmem:[#allocation8 + $0x38] sm:$0xff]
    %v407 = vld [vmem:[#allocation8 + $0x40] sm:$0xff]
    %v408 = vld [vmem:[#allocation8 + $0x48] sm:$0xff]
    %v409 = vld [vmem:[#allocation8 + $0x50] sm:$0xff]
    %v410 = vld [vmem:[#allocation8 + $0x58] sm:$0xff]
    %v411 = vld [vmem:[#allocation8 + $0x60] sm:$0xff]
    %v412 = vld [vmem:[#allocation8 + $0x68] sm:$0xff]
    %v413 = vld [vmem:[#allocation8 + $0x70] sm:$0xff]
    %v414 = vld [vmem:[#allocation8 + $0x78] sm:$0xff]
    %v415 = vld [vmem:[#allocation8 + $0x80] sm:$0xff]
    %v416 = vld [vmem:[#allocation8 + $0x88] sm:$0xff]
    %v417 = vld [vmem:[#allocation8 + $0x90] sm:$0xff]
    %v418 = vld [vmem:[#allocation8 + $0x98] sm:$0xff]
    %v419 = vld [vmem:[#allocation8 + $0xa0] sm:$0xff]
    %v420 = vld [vmem:[#allocation8 + $0xa8] sm:$0xff]
    %v421 = vld [vmem:[#allocation8 + $0xb0] sm:$0xff]
    %v422 = vld [vmem:[#allocation8 + $0xb8] sm:$0xff]
    %v423 = vld [vmem:[#allocation8 + $0xc0] sm:$0xff]
    %v424 = vld [vmem:[#allocation8 + $0xc8] sm:$0xff]
    %v425 = vld [vmem:[#allocation8 + $0xd0] sm:$0xff]
    %v426 = vld [vmem:[#allocation8 + $0xd8] sm:$0xff]
    %v427 = vld [vmem:[#allocation8 + $0xe0] sm:$0xff]
    %v428 = vld [vmem:[#allocation8 + $0xe8] sm:$0xff]
    %v429 = vld [vmem:[#allocation8 + $0xf0] sm:$0xff]
    %v430 = vld [vmem:[#allocation8 + $0xf8] sm:$0xff]
    %v431 = vld [vmem:[#allocation8 + $0x100] sm:$0xff]
    %v432 = vld [vmem:[#allocation8 + $0x108] sm:$0xff]
    %v433 = vld [vmem:[#allocation8 + $0x110] sm:$0xff]
    %v434 = vld [vmem:[#allocation8 + $0x118] sm:$0xff]
    %v435 = vld [vmem:[#allocation8 + $0x120] sm:$0xff]
    %v436 = vld [vmem:[#allocation8 + $0x128] sm:$0xff]
    %v437 = vld [vmem:[#allocation8 + $0x130] sm:$0xff]
    %v438 = vld [vmem:[#allocation8 + $0x138] sm:$0xff]
    %v439 = vld [vmem:[#allocation8 + $0x140] sm:$0xff]
    %v440 = vld [vmem:[#allocation8 + $0x148] sm:$0xff]
    %v441 = vld [vmem:[#allocation8 + $0x150] sm:$0xff]
    %v442 = vld [vmem:[#allocation8 + $0x158] sm:$0xff]
    %v443 = vld [vmem:[#allocation8 + $0x160] sm:$0xff]
    %v444 = vld [vmem:[#allocation8 + $0x168] sm:$0xff]
    %v445 = vld [vmem:[#allocation8 + $0x170] sm:$0xff]
    %v446 = vld [vmem:[#allocation8 + $0x178] sm:$0xff]
    %v447 = vld [vmem:[#allocation8 + $0x180] sm:$0xff]
    %v448 = vld [vmem:[#allocation8 + $0x188] sm:$0xff]
    %v449 = vld [vmem:[#allocation8 + $0x190] sm:$0xff]
    %v450 = vld [vmem:[#allocation8 + $0x198] sm:$0xff]
    %v451 = vld [vmem:[#allocation8 + $0x1a0] sm:$0xff]
    %v452 = vld [vmem:[#allocation8 + $0x1a8] sm:$0xff]
    %v453 = vld [vmem:[#allocation8 + $0x1b0] sm:$0xff]
    %v454 = vld [vmem:[#allocation8 + $0x1b8] sm:$0xff]
    %v455 = vld [vmem:[#allocation8 + $0x1c0] sm:$0xff]
    %v456 = vld [vmem:[#allocation8 + $0x1c8] sm:$0xff]
    %v457 = vld [vmem:[#allocation8 + $0x1d0] sm:$0xff]
    %v458 = vld [vmem:[#allocation8 + $0x1d8] sm:$0xff]
    %v459 = vld [vmem:[#allocation8 + $0x1e0] sm:$0xff]
    %v460 = vld [vmem:[#allocation8 + $0x1e8] sm:$0xff]
    %v461 = vld [vmem:[#allocation8 + $0x1f0] sm:$0xff]
    %v462 = vld [vmem:[#allocation8 + $0x1f8] sm:$0xff]
    %v463 = vld [vmem:[%s6] sm:$0x3]
    %v465 = vlaneseq
    %v466 = vshrl.u32 %v465, 7
    %v467 = vsub.s32 0, %v466
    %v468 = vrot.slane %v463, %v467
    %v469 = vlaneseq
    %v470 = vshrl.u32 %v469, 7
    %v471 = vsub.s32 1, %v470
    %v472 = vrot.slane %v463, %v471
    %475 = vmatprep.subr.mxu0 %v430
    %476 = vmatpush1.msra.mxu0 %v429
    %477 = vmatprep.subr.mxu0 %v428
    %478 = vmatpush1.msra.mxu0 %v427
    %479 = vmatprep.subr.mxu0 %v426
    %480 = vmatpush1.msra.mxu0 %v425
    %481 = vmatprep.subr.mxu0 %v424
    %482 = vmatpush1.msra.mxu0 %v423
    %483 = vmatprep.subr.mxu0 %v422
    %484 = vmatpush1.msra.mxu0 %v421
    %485 = vmatprep.subr.mxu0 %v420
    %486 = vmatpush1.msra.mxu0 %v419
    %487 = vmatprep.subr.mxu0 %v418
    %488 = vmatpush1.msra.mxu0 %v417
    %489 = vmatprep.subr.mxu0 %v416
    %490 = vmatpush1.msra.mxu0 %v415
    %491 = vmatprep.subr.mxu0 %v414
    %492 = vmatpush1.msra.mxu0 %v413
    %493 = vmatprep.subr.mxu0 %v412
    %494 = vmatpush1.msra.mxu0 %v411
    %495 = vmatprep.subr.mxu0 %v410
    %496 = vmatpush1.msra.mxu0 %v409
    %497 = vmatprep.subr.mxu0 %v408
    %498 = vmatpush1.msra.mxu0 %v407
    %499 = vmatprep.subr.mxu0 %v406
    %500 = vmatpush1.msra.mxu0 %v405
    %501 = vmatprep.subr.mxu0 %v404
    %502 = vmatpush1.msra.mxu0 %v403
    %503 = vmatprep.subr.mxu0 %v402
    %504 = vmatpush1.msra.mxu0 %v401
    %505 = vmatprep.subr.mxu0 %v400
    %506 = vmatpush1.msra.mxu0 %v399
    %507 = vmatprep.subr.mxu0 %v462
    %508 = vmatpush2.msra.mxu0 %v461
    %509 = vmatprep.subr.mxu0 %v460
    %510 = vmatpush2.msra.mxu0 %v459
    %511 = vmatprep.subr.mxu0 %v458
    %512 = vmatpush2.msra.mxu0 %v457
    %513 = vmatprep.subr.mxu0 %v456
    %514 = vmatpush2.msra.mxu0 %v455
    %515 = vmatprep.subr.mxu0 %v454
    %516 = vmatpush2.msra.mxu0 %v453
    %517 = vmatprep.subr.mxu0 %v452
    %518 = vmatpush2.msra.mxu0 %v451
    %519 = vmatprep.subr.mxu0 %v450
    %520 = vmatpush2.msra.mxu0 %v449
    %521 = vmatprep.subr.mxu0 %v448
    %522 = vmatpush2.msra.mxu0 %v447
    %523 = vmatprep.subr.mxu0 %v446
    %524 = vmatpush2.msra.mxu0 %v445
    %525 = vmatprep.subr.mxu0 %v444
    %526 = vmatpush2.msra.mxu0 %v443
    %527 = vmatprep.subr.mxu0 %v442
    %528 = vmatpush2.msra.mxu0 %v441
    %529 = vmatprep.subr.mxu0 %v440
    %530 = vmatpush2.msra.mxu0 %v439
    %531 = vmatprep.subr.mxu0 %v438
    %532 = vmatpush2.msra.mxu0 %v437
    %533 = vmatprep.subr.mxu0 %v436
    %534 = vmatpush2.msra.mxu0 %v435
    %535 = vmatprep.subr.mxu0 %v434
    %536 = vmatpush2.msra.mxu0 %v433
    %537 = vmatprep.subr.mxu0 %v432
    %538 = vmatpush2.msra.mxu0 %v431
    %539 = vmatprep.mubr.f32.mxu0 %v398
    %540 = vmatmul.mubr.f32.gmra.mxu0 %v397
    %v541 = vpop.f32.mrf.mxu0
    %v542 = vadd.f32 %v468, %v541
    %v543 = vpop.f32.mrf.mxu0
    %v544 = vadd.f32 %v472, %v543
    %545 = vdwg.mxu0
    %v546 = vmax.f32 %v542, 0.0
    %v547 = vmax.f32 %v544, 0.0
    %v548 = vld [vmem:[#allocation10] sm:$0xff]
    %v549 = vld [vmem:[#allocation10 + $0x8] sm:$0xff]
    %v550 = vld [vmem:[#allocation10 + $0x10] sm:$0xff]
    %v551 = vld [vmem:[#allocation10 + $0x18] sm:$0xff]
    %v552 = vld [vmem:[#allocation10 + $0x20] sm:$0xff]
    %v553 = vld [vmem:[#allocation10 + $0x28] sm:$0xff]
    %v554 = vld [vmem:[#allocation10 + $0x30] sm:$0xff]
    %v555 = vld [vmem:[#allocation10 + $0x38] sm:$0xff]
    %v556 = vld [vmem:[#allocation10 + $0x40] sm:$0xff]
    %v557 = vld [vmem:[#allocation10 + $0x48] sm:$0xff]
    %v558 = vld [vmem:[#allocation10 + $0x50] sm:$0xff]
    %v559 = vld [vmem:[#allocation10 + $0x58] sm:$0xff]
    %v560 = vld [vmem:[#allocation10 + $0x60] sm:$0xff]
    %v561 = vld [vmem:[#allocation10 + $0x68] sm:$0xff]
    %v562 = vld [vmem:[#allocation10 + $0x70] sm:$0xff]
    %v563 = vld [vmem:[#allocation10 + $0x78] sm:$0xff]
    %v564 = vld [vmem:[#allocation10 + $0x80] sm:$0xff]
    %v565 = vld [vmem:[#allocation10 + $0x88] sm:$0xff]
    %v566 = vld [vmem:[#allocation10 + $0x90] sm:$0xff]
    %v567 = vld [vmem:[#allocation10 + $0x98] sm:$0xff]
    %v568 = vld [vmem:[#allocation10 + $0xa0] sm:$0xff]
    %v569 = vld [vmem:[#allocation10 + $0xa8] sm:$0xff]
    %v570 = vld [vmem:[#allocation10 + $0xb0] sm:$0xff]
    %v571 = vld [vmem:[#allocation10 + $0xb8] sm:$0xff]
    %v572 = vld [vmem:[#allocation10 + $0xc0] sm:$0xff]
    %v573 = vld [vmem:[#allocation10 + $0xc8] sm:$0xff]
    %v574 = vld [vmem:[#allocation10 + $0xd0] sm:$0xff]
    %v575 = vld [vmem:[#allocation10 + $0xd8] sm:$0xff]
    %v576 = vld [vmem:[#allocation10 + $0xe0] sm:$0xff]
    %v577 = vld [vmem:[#allocation10 + $0xe8] sm:$0xff]
    %v578 = vld [vmem:[#allocation10 + $0xf0] sm:$0xff]
    %v579 = vld [vmem:[#allocation10 + $0xf8] sm:$0xff]
    %v580 = vld [vmem:[#allocation10 + $0x100] sm:$0xff]
    %v581 = vld [vmem:[#allocation10 + $0x108] sm:$0xff]
    %v582 = vld [vmem:[#allocation10 + $0x110] sm:$0xff]
    %v583 = vld [vmem:[#allocation10 + $0x118] sm:$0xff]
    %v584 = vld [vmem:[#allocation10 + $0x120] sm:$0xff]
    %v585 = vld [vmem:[#allocation10 + $0x128] sm:$0xff]
    %v586 = vld [vmem:[#allocation10 + $0x130] sm:$0xff]
    %v587 = vld [vmem:[#allocation10 + $0x138] sm:$0xff]
    %v588 = vld [vmem:[#allocation10 + $0x140] sm:$0xff]
    %v589 = vld [vmem:[#allocation10 + $0x148] sm:$0xff]
    %v590 = vld [vmem:[#allocation10 + $0x150] sm:$0xff]
    %v591 = vld [vmem:[#allocation10 + $0x158] sm:$0xff]
    %v592 = vld [vmem:[#allocation10 + $0x160] sm:$0xff]
    %v593 = vld [vmem:[#allocation10 + $0x168] sm:$0xff]
    %v594 = vld [vmem:[#allocation10 + $0x170] sm:$0xff]
    %v595 = vld [vmem:[#allocation10 + $0x178] sm:$0xff]
    %v596 = vld [vmem:[#allocation10 + $0x180] sm:$0xff]
    %v597 = vld [vmem:[#allocation10 + $0x188] sm:$0xff]
    %v598 = vld [vmem:[#allocation10 + $0x190] sm:$0xff]
    %v599 = vld [vmem:[#allocation10 + $0x198] sm:$0xff]
    %v600 = vld [vmem:[#allocation10 + $0x1a0] sm:$0xff]
    %v601 = vld [vmem:[#allocation10 + $0x1a8] sm:$0xff]
    %v602 = vld [vmem:[#allocation10 + $0x1b0] sm:$0xff]
    %v603 = vld [vmem:[#allocation10 + $0x1b8] sm:$0xff]
    %v604 = vld [vmem:[#allocation10 + $0x1c0] sm:$0xff]
    %v605 = vld [vmem:[#allocation10 + $0x1c8] sm:$0xff]
    %v606 = vld [vmem:[#allocation10 + $0x1d0] sm:$0xff]
    %v607 = vld [vmem:[#allocation10 + $0x1d8] sm:$0xff]
    %v608 = vld [vmem:[#allocation10 + $0x1e0] sm:$0xff]
    %v609 = vld [vmem:[#allocation10 + $0x1e8] sm:$0xff]
    %v610 = vld [vmem:[#allocation10 + $0x1f0] sm:$0xff]
    %v611 = vld [vmem:[#allocation10 + $0x1f8] sm:$0xff]
    %v612 = vld [vmem:[%s8] sm:$0x3]
    %v614 = vlaneseq
    %v615 = vshrl.u32 %v614, 7
    %v616 = vsub.s32 0, %v615
    %v617 = vrot.slane %v612, %v616
    %v618 = vlaneseq
    %v619 = vshrl.u32 %v618, 7
    %v620 = vsub.s32 1, %v619
    %v621 = vrot.slane %v612, %v620
    %624 = vmatprep.subr.mxu0 %v579
    %625 = vmatpush1.msra.mxu0 %v578
    %626 = vmatprep.subr.mxu0 %v577
    %627 = vmatpush1.msra.mxu0 %v576
    %628 = vmatprep.subr.mxu0 %v575
    %629 = vmatpush1.msra.mxu0 %v574
    %630 = vmatprep.subr.mxu0 %v573
    %631 = vmatpush1.msra.mxu0 %v572
    %632 = vmatprep.subr.mxu0 %v571
    %633 = vmatpush1.msra.mxu0 %v570
    %634 = vmatprep.subr.mxu0 %v569
    %635 = vmatpush1.msra.mxu0 %v568
    %636 = vmatprep.subr.mxu0 %v567
    %637 = vmatpush1.msra.mxu0 %v566
    %638 = vmatprep.subr.mxu0 %v565
    %639 = vmatpush1.msra.mxu0 %v564
    %640 = vmatprep.subr.mxu0 %v563
    %641 = vmatpush1.msra.mxu0 %v562
    %642 = vmatprep.subr.mxu0 %v561
    %643 = vmatpush1.msra.mxu0 %v560
    %644 = vmatprep.subr.mxu0 %v559
    %645 = vmatpush1.msra.mxu0 %v558
    %646 = vmatprep.subr.mxu0 %v557
    %647 = vmatpush1.msra.mxu0 %v556
    %648 = vmatprep.subr.mxu0 %v555
    %649 = vmatpush1.msra.mxu0 %v554
    %650 = vmatprep.subr.mxu0 %v553
    %651 = vmatpush1.msra.mxu0 %v552
    %652 = vmatprep.subr.mxu0 %v551
    %653 = vmatpush1.msra.mxu0 %v550
    %654 = vmatprep.subr.mxu0 %v549
    %655 = vmatpush1.msra.mxu0 %v548
    %656 = vmatprep.subr.mxu0 %v611
    %657 = vmatpush2.msra.mxu0 %v610
    %658 = vmatprep.subr.mxu0 %v609
    %659 = vmatpush2.msra.mxu0 %v608
    %660 = vmatprep.subr.mxu0 %v607
    %661 = vmatpush2.msra.mxu0 %v606
    %662 = vmatprep.subr.mxu0 %v605
    %663 = vmatpush2.msra.mxu0 %v604
    %664 = vmatprep.subr.mxu0 %v603
    %665 = vmatpush2.msra.mxu0 %v602
    %666 = vmatprep.subr.mxu0 %v601
    %667 = vmatpush2.msra.mxu0 %v600
    %668 = vmatprep.subr.mxu0 %v599
    %669 = vmatpush2.msra.mxu0 %v598
    %670 = vmatprep.subr.mxu0 %v597
    %671 = vmatpush2.msra.mxu0 %v596
    %672 = vmatprep.subr.mxu0 %v595
    %673 = vmatpush2.msra.mxu0 %v594
    %674 = vmatprep.subr.mxu0 %v593
    %675 = vmatpush2.msra.mxu0 %v592
    %676 = vmatprep.subr.mxu0 %v591
    %677 = vmatpush2.msra.mxu0 %v590
    %678 = vmatprep.subr.mxu0 %v589
    %679 = vmatpush2.msra.mxu0 %v588
    %680 = vmatprep.subr.mxu0 %v587
    %681 = vmatpush2.msra.mxu0 %v586
    %682 = vmatprep.subr.mxu0 %v585
    %683 = vmatpush2.msra.mxu0 %v584
    %684 = vmatprep.subr.mxu0 %v583
    %685 = vmatpush2.msra.mxu0 %v582
    %686 = vmatprep.subr.mxu0 %v581
    %687 = vmatpush2.msra.mxu0 %v580
    %688 = vmatprep.mubr.f32.mxu0 %v547
    %689 = vmatmul.mubr.f32.gmra.mxu0 %v546
    %v690 = vpop.f32.mrf.mxu0
    %v691 = vadd.f32 %v617, %v690
    %v692 = vpop.f32.mrf.mxu0
    %v693 = vadd.f32 %v621, %v692
    %694 = vdwg.mxu0
    %v695 = vmax.f32 %v691, 0.0
    %v696 = vmax.f32 %v693, 0.0
    %697 = vst [vmem:[#allocation11] sm:$0xff] %v695
    %698 = vst [vmem:[#allocation11 + $0x8] sm:$0xff] %v696
    // Predicated region
    $region58: #{latent_translator_forward.1} parent=1 // pred_check
      _
    $region59: #{latent_translator_forward.1} parent=1 // pred_check_branch
      %700 = sbr.rel (0) target = $region61
    $region60: #{latent_translator_forward.1} parent=1 // pred_region
      %s702 = ssub.s32 256, 256
      %703 = vsyncadd [#allocation4], %s702
      %s705 = sshll.u32 [#allocation11], 4
      %s706 = int_to_ptr.vmem [resolvable:$true] %s705
      %708 = dma.vmem_to_hbm [thread:$0]  %s706, 256, %s9, [#allocation4]
    $region61: #{latent_translator_forward.1} parent=1 // pred_fallthru
      _
    // Predicated region
    $region62: #{latent_translator_forward.1} parent=1 // pred_check
      _
    $region63: #{latent_translator_forward.1} parent=1 // pred_check_branch
      %710 = sbr.rel (0) target = $region65
    $region64: #{latent_translator_forward.1} parent=1 // pred_region
      %711 = dma.done [#allocation4], 256
    $region65: #{latent_translator_forward.1} parent=1 // pred_fallthru
      _
    %712 = vsyncpa [#allocation3], 1
    %713 = vsyncpa [#allocation6], 1
    %714 = vsyncpa [#allocation9], 1
    %715 = vsyncpa [#allocation4], 1

</llo_original>
